<compile_context>
chip_gen: v7x
topology: tpu7x:2x2x1
jax: 0.10.0
libtpu: 0.0.40
codegen_flags: <defaults>
</compile_context>

<pallas_src>
import jax
import jax.numpy as jnp
from jax import lax
from jax.experimental import pallas as pl
from jax.experimental.pallas import tpu as pltpu


_SQRT_2_OVER_PI = 0.7978845608028654


def _gelu_tanh(x):
    # tanh-form GELU; tanh runs on the EUP slot (free w.r.t. the VALU).
    # TODO(synk): PyTorch nn.GELU() default is the exact erf form; the tanh
    # approximation deviates by <~3e-4 absolute.
    x3 = x * x * x
    return 0.5 * x * (1.0 + jnp.tanh(_SQRT_2_OVER_PI * (x + 0.044715 * x3)))


def ffn_kernel(x_ref, w1_ref, b1_ref, w2_ref, b2_ref, o_ref):
    """One grid step = one (tm, dim) row tile of the flattened input.

    Weights stay in their PyTorch (out_features, in_features) layout and are
    consumed via trans-B contractions (last dim vs last dim), so no transpose
    anywhere.  MXU inputs are in the weight dtype (bf16 by default); the
    accumulation stays f32 via preferred_element_type.
    """
    x = x_ref[...]                                    # (tm, dim)      f32
    xm = x.astype(w1_ref.dtype)                       # bf16 cast on the VPU

    # h = x @ W1.T + b1   -> (tm, hidden_p), f32 accumulation on the MXU.
    h = lax.dot_general(xm, w1_ref[...], (((1,), (1,)), ((), ())),
                        preferred_element_type=jnp.float32)
    h = h + b1_ref[...]                               # (1, hidden_p) broadcast

    g = _gelu_tanh(h)

    # y = g @ W2.T + b2   -> (tm, dim)
    y = lax.dot_general(g.astype(w2_ref.dtype), w2_ref[...],
                        (((1,), (1,)), ((), ())),
                        preferred_element_type=jnp.float32)
    y = y + b2_ref[...]                               # (1, dim) broadcast

    o_ref[...] = y.astype(o_ref.dtype)


def feedforward_forward(x, w1, b1, w2, b2, *, block_m=512,
                        mxu_dtype=jnp.bfloat16):
    """Fused ViT FeedForward forward pass.

    x:  (B, N, dim) float32
    w1: (hidden, dim), b1: (hidden,)  -- first nn.Linear (PyTorch layout)
    w2: (dim, hidden), b2: (dim,)     -- second nn.Linear (PyTorch layout)

    Dropout(p=0.0) is the identity and is omitted.
    # TODO(synk): training-mode dropout (p > 0) is not implemented.
    """
    B, N, dim = x.shape
    hidden = w1.shape[0]
    assert w1.shape == (hidden, dim)
    assert b1.shape == (hidden,)
    assert w2.shape == (dim, hidden)
    assert b2.shape == (dim,)

    # --- Pad only the *internal* hidden dim up to a lane multiple. Exact:
    # padded W1 rows / b1 entries give gelu(0)=0 activations that then meet
    # all-zero W2 columns.  No-op for production 128-multiple dims.
    hidden_p = ((hidden + 127) // 128) * 128
    if hidden_p != hidden:
        w1 = jnp.pad(w1, ((0, hidden_p - hidden), (0, 0)))
        b1 = jnp.pad(b1, ((0, hidden_p - hidden),))
        w2 = jnp.pad(w2, ((0, 0), (0, hidden_p - hidden)))

    # bf16 MXU-input weights (in production store them in HBM as bf16; this is
    # a one-off cast over the small weight arrays, never over x).
    w1m = w1.astype(mxu_dtype)
    w2m = w2.astype(mxu_dtype)
    b1_2d = b1.reshape(1, hidden_p).astype(jnp.float32)
    b2_2d = b2.reshape(1, dim).astype(jnp.float32)

    M = B * N
    x2 = x.reshape(M, dim)

    # --- Row-tile size.  No wrapper-side pad/slice: a ragged last tile is
    # handled by the Pallas pipeline (out-of-bounds output rows are dropped).
    if M <= 8:
        tm = M                                      # block == full array dim
    else:
        tm = max(8, (min(block_m, M) // 8) * 8)
        if pl.cdiv(M, tm) < 2:
            # Keep >= 2 row tiles so the "parallel" axis can be split across
            # both TensorCores on v7x (harmless on v5e / v6e).
            tm = max(8, ((((M + 1) // 2) + 7) // 8) * 8)
    n_tiles = pl.cdiv(M, tm)

    # --- Explicit VMEM budget: single-buffered weights + double-buffered
    # (tm, dim) input/output tiles + (tm, hidden_p) intermediates + headroom.
    w_itemsize = jnp.dtype(mxu_dtype).itemsize
    weight_bytes = (w1m.size + w2m.size) * w_itemsize + (hidden_p + dim) * 4
    io_bytes = 2 * (2 * tm * dim * 4)
    inter_bytes = 4 * tm * hidden_p * 4
    vmem_limit = int(min(max(2 * (weight_bytes + io_bytes + inter_bytes),
                             32 * 1024 * 1024),
                         128 * 1024 * 1024))

    # --- Advisory cost estimate for the XLA scheduler.
    flops = 4 * M * dim * hidden_p                  # two matmuls, 2 flops/MAC
    transcendentals = M * hidden_p                  # tanh in GELU
    bytes_accessed = int(
        x2.size * x2.dtype.itemsize
        + (w1m.size + w2m.size) * w_itemsize
        + (b1_2d.size + b2_2d.size) * 4
        + M * dim * x.dtype.itemsize)               # output

    out2 = pl.pallas_call(
        ffn_kernel,
        out_shape=jax.ShapeDtypeStruct((M, dim), x.dtype),
        grid_spec=pltpu.PrefetchScalarGridSpec(
            num_scalar_prefetch=0,
            grid=(n_tiles,),
            in_specs=[
                # x row tile (double-buffered by default -> DMA/compute overlap)
                pl.BlockSpec((tm, dim), lambda i: (i, 0)),
                # Grid-invariant weights/biases: VMEM-resident, single-buffered.
                pl.BlockSpec((hidden_p, dim), lambda i: (0, 0),
                             pipeline_mode=pl.Buffered(1)),
                pl.BlockSpec((1, hidden_p), lambda i: (0, 0),
                             pipeline_mode=pl.Buffered(1)),
                pl.BlockSpec((dim, hidden_p), lambda i: (0, 0),
                             pipeline_mode=pl.Buffered(1)),
                pl.BlockSpec((1, dim), lambda i: (0, 0),
                             pipeline_mode=pl.Buffered(1)),
            ],
            out_specs=pl.BlockSpec((tm, dim), lambda i: (i, 0)),
        ),
        compiler_params=pltpu.CompilerParams(
            dimension_semantics=("parallel",),
            vmem_limit_bytes=vmem_limit),
        cost_estimate=pl.CostEstimate(flops=flops,
                                      transcendentals=transcendentals,
                                      bytes_accessed=bytes_accessed),
    )(x2, w1m, b1_2d, w2m, b2_2d)

    return out2.reshape(B, N, dim)


def feedforward_reference(x, w1, b1, w2, b2):
    """Pure-JAX f32 reference mirroring the PyTorch forward (same GELU form)."""
    h = _gelu_tanh(x @ w1.T + b1)
    return h @ w2.T + b2


if __name__ == "__main__":
    # Small shapes consistent with the module: FeedForward(dim=32, hidden_dim=64)
    # applied to token sequences x of shape (batch=2, tokens=8, dim=32).
    B, N, dim, hidden = 2, 8, 32, 64

    key = jax.random.PRNGKey(0)
    kx, k1, kb1, k2, kb2 = jax.random.split(key, 5)

    x = jax.random.normal(kx, (B, N, dim), dtype=jnp.float32)
    w1 = jax.random.normal(k1, (hidden, dim), dtype=jnp.float32) * 0.05
    b1 = jax.random.normal(kb1, (hidden,), dtype=jnp.float32) * 0.05
    w2 = jax.random.normal(k2, (dim, hidden), dtype=jnp.float32) * 0.05
    b2 = jax.random.normal(kb2, (dim,), dtype=jnp.float32) * 0.05

    ref = feedforward_reference(x, w1, b1, w2, b2)

    # Default (perf) path: bf16 MXU inputs, f32 accumulation -> loose tolerance.
    out = feedforward_forward(x, w1, b1, w2, b2)
    out = jax.block_until_ready(out)
    assert out.shape == (B, N, dim)
    assert jnp.allclose(out, ref, atol=2e-2, rtol=2e-2), "bf16-path mismatch"

    # Exact-numerics path (mxu_dtype=f32) -> tight tolerance vs the reference.
    out_f32 = feedforward_forward(x, w1, b1, w2, b2, mxu_dtype=jnp.float32)
    out_f32 = jax.block_until_ready(out_f32)
    assert jnp.allclose(out_f32, ref, atol=1e-4, rtol=1e-4), "f32-path mismatch"

    print("KERNEL_OK")
</pallas_src>

<mosaic_0001>
module attributes {stable_mosaic.version = 11 : i64} {
  func.func @ffn_kernel(%arg0: i32, %arg1: memref<8x32xf32, #tpu.memory_space<vmem>>, %arg2: memref<128x32xbf16, #tpu.memory_space<vmem>>, %arg3: memref<1x128xf32, #tpu.memory_space<vmem>>, %arg4: memref<32x128xbf16, #tpu.memory_space<vmem>>, %arg5: memref<1x32xf32, #tpu.memory_space<vmem>>, %arg6: memref<8x32xf32, #tpu.memory_space<vmem>>) attributes {dimension_semantics = [#tpu.dimension_semantics<parallel>], iteration_bounds = array<i64: 2>, scalar_prefetch = 0 : i64, scratch_operands = 0 : i64, tpu.core_type = #tpu.core_type<tc>, window_params = [{transform_indices = @transform_0, window_bounds = array<i64: 8, 32>}, {pipeline_mode = #tpu.pipeline_mode<synchronous>, transform_indices = @transform_1, window_bounds = array<i64: 128, 32>}, {pipeline_mode = #tpu.pipeline_mode<synchronous>, transform_indices = @transform_2, window_bounds = array<i64: 1, 128>}, {pipeline_mode = #tpu.pipeline_mode<synchronous>, transform_indices = @transform_3, window_bounds = array<i64: 32, 128>}, {pipeline_mode = #tpu.pipeline_mode<synchronous>, transform_indices = @transform_4, window_bounds = array<i64: 1, 32>}, {transform_indices = @transform_5, window_bounds = array<i64: 8, 32>}]} {
    %c0 = arith.constant 0 : index
    %c0_0 = arith.constant 0 : index
    %0 = vector.load %arg1[%c0, %c0_0] : memref<8x32xf32, #tpu.memory_space<vmem>>, vector<8x32xf32>
    %1 = arith.truncf %0 : vector<8x32xf32> to vector<8x32xbf16>
    %c0_1 = arith.constant 0 : index
    %c0_2 = arith.constant 0 : index
    %2 = vector.load %arg2[%c0_1, %c0_2] : memref<128x32xbf16, #tpu.memory_space<vmem>>, vector<128x32xbf16>
    %cst = arith.constant dense<0.000000e+00> : vector<8x128xf32>
    %3 = tpu.matmul %1, %2, %cst {dimension_numbers = #tpu.dot_dimension_numbers<[1], [1], [0], [0], [0, 0, 1, 0], [], []>} : vector<8x32xbf16>, vector<128x32xbf16>, vector<8x128xf32> -> vector<8x128xf32>
    %c0_3 = arith.constant 0 : index
    %c0_4 = arith.constant 0 : index
    %4 = vector.load %arg3[%c0_3, %c0_4] : memref<1x128xf32, #tpu.memory_space<vmem>>, vector<1x128xf32>
    %5 = vector.broadcast %4 : vector<1x128xf32> to vector<8x128xf32>
    %6 = arith.addf %3, %5 : vector<8x128xf32>
    %7 = arith.mulf %6, %6 : vector<8x128xf32>
    %8 = arith.mulf %7, %6 : vector<8x128xf32>
    %cst_5 = arith.constant 5.000000e-01 : f32
    %9 = vector.broadcast %cst_5 : f32 to vector<8x128xf32>
    %10 = arith.mulf %9, %6 : vector<8x128xf32>
    %cst_6 = arith.constant 4.471500e-02 : f32
    %11 = vector.broadcast %cst_6 : f32 to vector<8x128xf32>
    %12 = arith.mulf %11, %8 : vector<8x128xf32>
    %13 = arith.addf %6, %12 : vector<8x128xf32>
    %cst_7 = arith.constant 0.797884583 : f32
    %14 = vector.broadcast %cst_7 : f32 to vector<8x128xf32>
    %15 = arith.mulf %14, %13 : vector<8x128xf32>
    %16 = math.tanh %15 : vector<8x128xf32>
    %cst_8 = arith.constant 1.000000e+00 : f32
    %17 = vector.broadcast %cst_8 : f32 to vector<8x128xf32>
    %18 = arith.addf %17, %16 : vector<8x128xf32>
    %19 = arith.mulf %10, %18 : vector<8x128xf32>
    %20 = arith.truncf %19 : vector<8x128xf32> to vector<8x128xbf16>
    %c0_9 = arith.constant 0 : index
    %c0_10 = arith.constant 0 : index
    %21 = vector.load %arg4[%c0_9, %c0_10] : memref<32x128xbf16, #tpu.memory_space<vmem>>, vector<32x128xbf16>
    %cst_11 = arith.constant dense<0.000000e+00> : vector<8x32xf32>
    %22 = tpu.matmul %20, %21, %cst_11 {dimension_numbers = #tpu.dot_dimension_numbers<[1], [1], [0], [0], [0, 0, 1, 0], [], []>} : vector<8x128xbf16>, vector<32x128xbf16>, vector<8x32xf32> -> vector<8x32xf32>
    %c0_12 = arith.constant 0 : index
    %c0_13 = arith.constant 0 : index
    %23 = vector.load %arg5[%c0_12, %c0_13] : memref<1x32xf32, #tpu.memory_space<vmem>>, vector<1x32xf32>
    %24 = vector.broadcast %23 : vector<1x32xf32> to vector<8x32xf32>
    %25 = arith.addf %22, %24 : vector<8x32xf32>
    %c0_14 = arith.constant 0 : index
    %c0_15 = arith.constant 0 : index
    %26 = vector.load %arg6[%c0_14, %c0_15] : memref<8x32xf32, #tpu.memory_space<vmem>>, vector<8x32xf32>
    tpu.vector_store %arg6[%c0_14, %c0_15], %25 {strides = array<i32>} : memref<8x32xf32, #tpu.memory_space<vmem>>, vector<8x32xf32>,
    return
  }
  func.func @transform_0(%arg0: i32) -> (i32, i32) {
    %c0_i32 = arith.constant 0 : i32
    %c0_i32_0 = arith.constant 0 : i32
    return %arg0, %c0_i32 : i32, i32
  }
  func.func @transform_1(%arg0: i32) -> (i32, i32) {
    %c0_i32 = arith.constant 0 : i32
    %c0_i32_0 = arith.constant 0 : i32
    %c0_i32_1 = arith.constant 0 : i32
    return %c0_i32, %c0_i32_0 : i32, i32
  }
  func.func @transform_2(%arg0: i32) -> (i32, i32) {
    %c0_i32 = arith.constant 0 : i32
    %c0_i32_0 = arith.constant 0 : i32
    %c0_i32_1 = arith.constant 0 : i32
    return %c0_i32, %c0_i32_0 : i32, i32
  }
  func.func @transform_3(%arg0: i32) -> (i32, i32) {
    %c0_i32 = arith.constant 0 : i32
    %c0_i32_0 = arith.constant 0 : i32
    %c0_i32_1 = arith.constant 0 : i32
    return %c0_i32, %c0_i32_0 : i32, i32
  }
  func.func @transform_4(%arg0: i32) -> (i32, i32) {
    %c0_i32 = arith.constant 0 : i32
    %c0_i32_0 = arith.constant 0 : i32
    %c0_i32_1 = arith.constant 0 : i32
    return %c0_i32, %c0_i32_0 : i32, i32
  }
  func.func @transform_5(%arg0: i32) -> (i32, i32) {
    %c0_i32 = arith.constant 0 : i32
    %c0_i32_0 = arith.constant 0 : i32
    return %arg0, %c0_i32 : i32, i32
  }
}

</mosaic_0001>

<llo_original>
// kernel: tpu_custom_call.1
$region0: #{tpu_custom_call.1}
  #allocation0 [shape = 'u32[]', space=smem, size = 0x4, offset = 0x4, fixed_abs, tag = 'smem constant byte address 0x4 - core index']
  #allocation1 [shape = 'u32[144,128]{1,0:T(1,128)}', space=vmem, size = 0x12000, scoped, tag = 'internal scratch']
  %s0 = inlined_call_operand.vmem [shape: f32[16,32], index: 0, kind: input, shape index: {}]
  %s1 = inlined_call_operand.vmem [shape: bf16[128,32], index: 1, kind: input, shape index: {}]
  %s2 = inlined_call_operand.vmem [shape: f32[1,128], index: 2, kind: input, shape index: {}]
  %s3 = inlined_call_operand.vmem [shape: bf16[32,128], index: 3, kind: input, shape index: {}]
  %s4 = inlined_call_operand.vmem [shape: f32[1,32], index: 4, kind: input, shape index: {}]
  %s5 = inlined_call_operand.hbm [shape: f32[16,32], index: 5, kind: output, shape index: {}]
  %s6 = sld [smem:[#allocation0]]
  $region53: #{tpu_custom_call.1} parent=0
    _
  %s8 = ssub.s32 1, %s6
  %s9 = scalar_select 0, %s8, %s6
  $region1: #{tpu_custom_call.1} parent=0
    #allocation2 [shape = 'u8[8192]{0}', space=vmem, size = 0x2000, scoped, tag = 'output window, operand 0']
    #allocation3 [shape = 's32[2]{0}', space=sflag, size = 0x8, scoped, tag = 'scoped memory for tpu_custom_call.1']
    %10 = vsyncpa [#allocation3], 0
    %s11 = scalar_lea.sflag [#allocation3], 1
    %12 = vsyncpa %s11, 0
    loop: start=0, step=1, limit=4
    $region2: #{tpu_custom_call.1} parent=1 // loop_pre_header
      _
    $region3: #{tpu_custom_call.1} parent=1 // loop_header
      %s14 = sphi 0, %s18
      %p15 = scmp.ge.s32.totalorder %s14, 4
      %s24 = sphi 0, %s26
      %s27 = sphi 0, %s24
      %s28 = sphi 0, %s27
      %s44 = sphi 0, %s28
      %s48 = sphi 0, %s48
      %s50 = sphi 0, %s48
      %s51 = sphi 0, %s50
      %s65 = sphi 0, %s51
      %s69 = sphi 0, %s69
      %s71 = sphi 0, %s69
      %s72 = sphi 0, %s71
      %s86 = sphi 0, %s72
      %s90 = sphi 0, %s90
      %s92 = sphi 0, %s90
      %s93 = sphi 0, %s92
      %s107 = sphi 0, %s93
      %s111 = sphi 0, %s111
      %s113 = sphi 0, %s111
      %s114 = sphi 0, %s113
      %s128 = sphi 0, %s114
      %s134 = sphi 0, %s136
      %s137 = sphi 0, %s134
      %s138 = sphi 0, %s137
      %s154 = sphi 0, %s138
    $region4: #{tpu_custom_call.1} parent=1 // loop_header_branch
      %17 = sbr.rel (%p15) target = $region8
    $region5: #{tpu_custom_call.1} parent=1 // loop_body
      %s19 = ssub.s32 %s14, 1
      %s20 = ssub.s32 %s14, 2
      %s21 = sadd.s32 %s14, 1
      %s22 = ssub.s32 %s14, %s21
      %p23 = scmp.eq.s32.totalorder %s22, 0
      %s25 = sadd.s32 %s24, 1
      %s26 = scalar_select %p23, %s24, %s25
      %p29 = pneg %p23
      %p30 = scmp.eq.s32.totalorder %s14, 1
      %p31 = por %p29, %p30
      %p32 = scmp.ne.s32.totalorder %s24, %s27
      %p33 = scmp.eq.s32.totalorder %s14, 0
      %p34 = por %p32, %p33
      %p35 = scmp.ne.s32.totalorder %s24, %s27
      %p36 = scmp.eq.s32.totalorder %s19, 1
      %p37 = por %p35, %p36
      %p38 = scmp.ne.s32.totalorder %s27, %s28
      %p39 = scmp.eq.s32.totalorder %s19, 0
      %p40 = por %p38, %p39
      %p41 = scmp.ne.s32.totalorder %s27, %s28
      %p42 = scmp.eq.s32.totalorder %s20, 1
      %p43 = por %p41, %p42
      %p45 = scmp.ne.s32.totalorder %s28, %s44
      %p46 = scmp.eq.s32.totalorder %s20, 0
      %p47 = por %p45, %p46
      %s49 = sadd.s32 %s48, 1
      %p52 = scmp.eq.s32.totalorder %s14, 1
      %p53 = scmp.ne.s32.totalorder %s48, %s50
      %p54 = scmp.eq.s32.totalorder %s14, 0
      %p55 = por %p53, %p54
      %p56 = scmp.ne.s32.totalorder %s48, %s50
      %p57 = scmp.eq.s32.totalorder %s19, 1
      %p58 = por %p56, %p57
      %p59 = scmp.ne.s32.totalorder %s50, %s51
      %p60 = scmp.eq.s32.totalorder %s19, 0
      %p61 = por %p59, %p60
      %p62 = scmp.ne.s32.totalorder %s50, %s51
      %p63 = scmp.eq.s32.totalorder %s20, 1
      %p64 = por %p62, %p63
      %p66 = scmp.ne.s32.totalorder %s51, %s65
      %p67 = scmp.eq.s32.totalorder %s20, 0
      %p68 = por %p66, %p67
      %s70 = sadd.s32 %s69, 1
      %p73 = scmp.eq.s32.totalorder %s14, 1
      %p74 = scmp.ne.s32.totalorder %s69, %s71
      %p75 = scmp.eq.s32.totalorder %s14, 0
      %p76 = por %p74, %p75
      %p77 = scmp.ne.s32.totalorder %s69, %s71
      %p78 = scmp.eq.s32.totalorder %s19, 1
      %p79 = por %p77, %p78
      %p80 = scmp.ne.s32.totalorder %s71, %s72
      %p81 = scmp.eq.s32.totalorder %s19, 0
      %p82 = por %p80, %p81
      %p83 = scmp.ne.s32.totalorder %s71, %s72
      %p84 = scmp.eq.s32.totalorder %s20, 1
      %p85 = por %p83, %p84
      %p87 = scmp.ne.s32.totalorder %s72, %s86
      %p88 = scmp.eq.s32.totalorder %s20, 0
      %p89 = por %p87, %p88
      %s91 = sadd.s32 %s90, 1
      %p94 = scmp.eq.s32.totalorder %s14, 1
      %p95 = scmp.ne.s32.totalorder %s90, %s92
      %p96 = scmp.eq.s32.totalorder %s14, 0
      %p97 = por %p95, %p96
      %p98 = scmp.ne.s32.totalorder %s90, %s92
      %p99 = scmp.eq.s32.totalorder %s19, 1
      %p100 = por %p98, %p99
      %p101 = scmp.ne.s32.totalorder %s92, %s93
      %p102 = scmp.eq.s32.totalorder %s19, 0
      %p103 = por %p101, %p102
      %p104 = scmp.ne.s32.totalorder %s92, %s93
      %p105 = scmp.eq.s32.totalorder %s20, 1
      %p106 = por %p104, %p105
      %p108 = scmp.ne.s32.totalorder %s93, %s107
      %p109 = scmp.eq.s32.totalorder %s20, 0
      %p110 = por %p108, %p109
      %s112 = sadd.s32 %s111, 1
      %p115 = scmp.eq.s32.totalorder %s14, 1
      %p116 = scmp.ne.s32.totalorder %s111, %s113
      %p117 = scmp.eq.s32.totalorder %s14, 0
      %p118 = por %p116, %p117
      %p119 = scmp.ne.s32.totalorder %s111, %s113
      %p120 = scmp.eq.s32.totalorder %s19, 1
      %p121 = por %p119, %p120
      %p122 = scmp.ne.s32.totalorder %s113, %s114
      %p123 = scmp.eq.s32.totalorder %s19, 0
      %p124 = por %p122, %p123
      %p125 = scmp.ne.s32.totalorder %s113, %s114
      %p126 = scmp.eq.s32.totalorder %s20, 1
      %p127 = por %p125, %p126
      %p129 = scmp.ne.s32.totalorder %s114, %s128
      %p130 = scmp.eq.s32.totalorder %s20, 0
      %p131 = por %p129, %p130
      %s132 = ssub.s32 %s14, %s21
      %p133 = scmp.eq.s32.totalorder %s132, 0
      %s135 = sadd.s32 %s134, 1
      %s136 = scalar_select %p133, %s134, %s135
      %p139 = pneg %p133
      %p140 = scmp.eq.s32.totalorder %s14, 1
      %p141 = por %p139, %p140
      %p142 = scmp.ne.s32.totalorder %s134, %s137
      %p143 = scmp.eq.s32.totalorder %s14, 0
      %p144 = por %p142, %p143
      %p145 = scmp.ne.s32.totalorder %s134, %s137
      %p146 = scmp.eq.s32.totalorder %s19, 1
      %p147 = por %p145, %p146
      %p148 = scmp.ne.s32.totalorder %s137, %s138
      %p149 = scmp.eq.s32.totalorder %s19, 0
      %p150 = por %p148, %p149
      %p151 = scmp.ne.s32.totalorder %s137, %s138
      %p152 = scmp.eq.s32.totalorder %s20, 1
      %p153 = por %p151, %p152
      %p155 = scmp.ne.s32.totalorder %s138, %s154
      %p156 = scmp.eq.s32.totalorder %s20, 0
      %p157 = por %p155, %p156
      %p158 = scmp.le.s32.totalorder 1, %s14
      %p159 = scmp.lt.s32.totalorder %s14, 3
      %p160 = pnand %p158, %p159
      %p161 = pneg %p160
      // Predicated region
      $region9: #{tpu_custom_call.1} parent=5 // pred_check
        _
      $region10: #{tpu_custom_call.1} parent=5 // pred_check_branch
        %163 = sbr.rel (%p160) target = $region12
      $region11: #{tpu_custom_call.1} parent=5 // pred_region
        %s164 = ssub.s32 %s14, 1
        // Predicated region
        $region13: #{tpu_custom_call.1} parent=11 // pred_check
          %p165 = pneg %p61
        $region14: #{tpu_custom_call.1} parent=11 // pred_check_branch
          %167 = sbr.rel (%p165) target = $region16
        $region15: #{tpu_custom_call.1} parent=11 // pred_region
          _
        $region16: #{tpu_custom_call.1} parent=11 // pred_fallthru
          _
        // Predicated region
        $region17: #{tpu_custom_call.1} parent=11 // pred_check
          %p168 = pneg %p82
        $region18: #{tpu_custom_call.1} parent=11 // pred_check_branch
          %170 = sbr.rel (%p168) target = $region20
        $region19: #{tpu_custom_call.1} parent=11 // pred_region
          _
        $region20: #{tpu_custom_call.1} parent=11 // pred_fallthru
          _
        // Predicated region
        $region21: #{tpu_custom_call.1} parent=11 // pred_check
          %p171 = pneg %p103
        $region22: #{tpu_custom_call.1} parent=11 // pred_check_branch
          %173 = sbr.rel (%p171) target = $region24
        $region23: #{tpu_custom_call.1} parent=11 // pred_region
          _
        $region24: #{tpu_custom_call.1} parent=11 // pred_fallthru
          _
        // Predicated region
        $region25: #{tpu_custom_call.1} parent=11 // pred_check
          %p174 = pneg %p124
        $region26: #{tpu_custom_call.1} parent=11 // pred_check_branch
          %176 = sbr.rel (%p174) target = $region28
        $region27: #{tpu_custom_call.1} parent=11 // pred_region
          _
        $region28: #{tpu_custom_call.1} parent=11 // pred_fallthru
          _
      $region12: #{tpu_custom_call.1} parent=5 // pred_fallthru
        _
      %p177 = scmp.lt.s32.totalorder %s14, 2
      // Predicated region
      $region29: #{tpu_custom_call.1} parent=5 // pred_check
        %p178 = pneg %p177
      $region30: #{tpu_custom_call.1} parent=5 // pred_check_branch
        %180 = sbr.rel (%p178) target = $region32
      $region31: #{tpu_custom_call.1} parent=5 // pred_region
        // Predicated region
        $region33: #{tpu_custom_call.1} parent=31 // pred_check
          %p181 = pneg %p34
        $region34: #{tpu_custom_call.1} parent=31 // pred_check_branch
          %183 = sbr.rel (%p181) target = $region36
        $region35: #{tpu_custom_call.1} parent=31 // pred_region
          %p184 = scmp.lt.s32.totalorder %s14, 1
          %s185 = scalar_select %p184, %s14, 1
          %s186 = smul.addr %s185, 8
          %s187 = scalar_lea.vmem %s0, %s186
        $region36: #{tpu_custom_call.1} parent=31 // pred_fallthru
          _
      $region32: #{tpu_custom_call.1} parent=5 // pred_fallthru
        _
      %p188 = scmp.le.s32.totalorder 1, %s14
      %p189 = scmp.lt.s32.totalorder %s14, 3
      %p190 = pnand %p188, %p189
      %p191 = pneg %p190
      // Predicated region
      $region37: #{tpu_custom_call.1} parent=5 // pred_check
        _
      $region38: #{tpu_custom_call.1} parent=5 // pred_check_branch
        %193 = sbr.rel (%p190) target = $region40
      $region39: #{tpu_custom_call.1} parent=5 // pred_region
        %s194 = ssub.s32 %s14, 1
        %p195 = scmp.lt.s32.totalorder %s19, 1
        %s196 = scalar_select %p195, %s19, 1
        %s197 = smul.addr %s196, 8
        %s198 = scalar_lea.vmem %s0, %s197
        %p199 = pneg %p40
        %p200 = pneg %p37
        %p201 = pneg %p61
        %p202 = pneg %p58
        %p203 = pneg %p82
        %p204 = pneg %p79
        %p205 = pneg %p103
        %p206 = pneg %p100
        %p207 = pneg %p124
        %p208 = pneg %p121
        %p209 = pneg %p150
        %p210 = pneg %p147
        %s211 = sand.u32 %s137, 1
        %s212 = scalar_lea.sflag [#allocation3], %s211
        %s213 = sand.u32 %s137, 1
        %s214 = smul.addr %s213, 8
        %s215 = scalar_lea.vmem [#allocation2], %s214
        %p216 = scmp.lt.s32.totalorder %s19, 1
        %s217 = scalar_select %p216, %s19, 1
        %s218 = smul.addr %s217, 8
        %s219 = scalar_lea.vmem %s0, %s218
        %v221 = vld [vmem:[%s219] sm:$0xff]
        %v222 = vpack.c.bf16 %v221, %v221
        %v223 = vld [vmem:[%s1] sm:$0xf]
        %v224 = vld [vmem:[%s1 + $0x4] sm:$0xf]
        %v225 = vld [vmem:[%s1 + $0x8] sm:$0xf]
        %v226 = vld [vmem:[%s1 + $0xc] sm:$0xf]
        %v227 = vld [vmem:[%s1 + $0x10] sm:$0xf]
        %v228 = vld [vmem:[%s1 + $0x14] sm:$0xf]
        %v229 = vld [vmem:[%s1 + $0x18] sm:$0xf]
        %v230 = vld [vmem:[%s1 + $0x1c] sm:$0xf]
        %v231 = vld [vmem:[%s1 + $0x20] sm:$0xf]
        %v232 = vld [vmem:[%s1 + $0x24] sm:$0xf]
        %v233 = vld [vmem:[%s1 + $0x28] sm:$0xf]
        %v234 = vld [vmem:[%s1 + $0x2c] sm:$0xf]
        %v235 = vld [vmem:[%s1 + $0x30] sm:$0xf]
        %v236 = vld [vmem:[%s1 + $0x34] sm:$0xf]
        %v237 = vld [vmem:[%s1 + $0x38] sm:$0xf]
        %v238 = vld [vmem:[%s1 + $0x3c] sm:$0xf]
        %v239 = vld [vmem:[%s2] sm:$0x1]
        %v241 = vlaneseq
        %v242 = vshrl.u32 %v241, 7
        %v243 = vsub.s32 0, %v242
        %v244 = vrot.slane %v239, %v243
        %v262 = vunpack.c.l.b16 %v223
        %v263 = vunpack.c.l.b16 %v224
        %v264 = vunpack.c.l.b16 %v225
        %v265 = vunpack.c.l.b16 %v226
        %v266 = vunpack.c.l.b16 %v227
        %v267 = vunpack.c.l.b16 %v228
        %v268 = vunpack.c.l.b16 %v229
        %v269 = vunpack.c.l.b16 %v230
        %v270 = vunpack.c.l.b16 %v231
        %v271 = vunpack.c.l.b16 %v232
        %v272 = vunpack.c.l.b16 %v233
        %v273 = vunpack.c.l.b16 %v234
        %v274 = vunpack.c.l.b16 %v235
        %v275 = vunpack.c.l.b16 %v236
        %v276 = vunpack.c.l.b16 %v237
        %v277 = vunpack.c.l.b16 %v238
        %v278 = vpack.c.b16 %v263, %v262
        %v279 = vpack.c.b16 %v265, %v264
        %v280 = vpack.c.b16 %v267, %v266
        %v281 = vpack.c.b16 %v269, %v268
        %v282 = vpack.c.b16 %v271, %v270
        %v283 = vpack.c.b16 %v273, %v272
        %v284 = vpack.c.b16 %v275, %v274
        %v285 = vpack.c.b16 %v277, %v276
        %vm286 = vcmask 261120
        %v288 = vsel %vm286, %v222, 0
        %v291 = vsel %vm286, %v278, 0
        %v294 = vsel %vm286, %v279, 0
        %v297 = vsel %vm286, %v280, 0
        %v300 = vsel %vm286, %v281, 0
        %v303 = vsel %vm286, %v282, 0
        %v306 = vsel %vm286, %v283, 0
        %v309 = vsel %vm286, %v284, 0
        %v312 = vsel %vm286, %v285, 0
        %314 = vmatprep.subr.bf16.mxu0 0
        %315 = vmatpush1.bf16.xpose.msra.mxu0 %v291
        %316 = vmatprep.subr.bf16.mxu0 0
        %317 = vmatpush1.bf16.xpose.msra.mxu0 %v294
        %318 = vmatprep.subr.bf16.mxu0 0
        %319 = vmatpush1.bf16.xpose.msra.mxu0 %v297
        %320 = vmatprep.subr.bf16.mxu0 0
        %321 = vmatpush1.bf16.xpose.msra.mxu0 %v300
        %322 = vmatprep.subr.bf16.mxu0 0
        %323 = vmatpush1.bf16.xpose.msra.mxu0 %v303
        %324 = vmatprep.subr.bf16.mxu0 0
        %325 = vmatpush1.bf16.xpose.msra.mxu0 %v306
        %326 = vmatprep.subr.bf16.mxu0 0
        %327 = vmatpush1.bf16.xpose.msra.mxu0 %v309
        %328 = vmatprep.subr.bf16.mxu0 0
        %329 = vmatpush1.bf16.xpose.msra.mxu0 %v312
        %330 = vmatprep.subr.bf16.mxu0 0
        %331 = vmatpush1.bf16.xpose.msra.mxu0 0
        %332 = vmatprep.subr.bf16.mxu0 0
        %333 = vmatpush1.bf16.xpose.msra.mxu0 0
        %334 = vmatprep.subr.bf16.mxu0 0
        %335 = vmatpush1.bf16.xpose.msra.mxu0 0
        %336 = vmatprep.subr.bf16.mxu0 0
        %337 = vmatpush1.bf16.xpose.msra.mxu0 0
        %338 = vmatprep.subr.bf16.mxu0 0
        %339 = vmatpush1.bf16.xpose.msra.mxu0 0
        %340 = vmatprep.subr.bf16.mxu0 0
        %341 = vmatpush1.bf16.xpose.msra.mxu0 0
        %342 = vmatprep.subr.bf16.mxu0 0
        %343 = vmatpush1.bf16.xpose.msra.mxu0 0
        %344 = vmatprep.subr.bf16.mxu0 0
        %345 = vmatpush1.bf16.xpose.msra.mxu0 0
        %346 = vmatprep.mubr.bf16.mxu0 0
        %347 = vmatmul.mubr.bf16.gmra.mrb[0].mxu0 %v288
        %v348 = vpop.f32.mrb[0].mxu0
        %v349 = vadd.f32 %v244, %v348
        %v350 = vpop.f32.mrb[0].mxu0
        %v351 = vpop.f32.mrb[0].mxu0
        %v352 = vpop.f32.mrb[0].mxu0
        %353 = vdwg.mxu0
        %v354 = vmul.f32 %v349, %v349
        %v355 = vmul.f32 %v354, %v349
        %v356 = vmul.f32 %v349, 0.5
        %v357 = vmul.f32 %v355, 0.044715
        %v358 = vadd.f32 %v349, %v357
        %v359 = vmul.f32 %v358, 0.7978846
        %v360 = vtanh.pop %v359
        %v361 = vadd.f32 %v360, 1.0
        %v362 = vmul.f32 %v356, %v361
        %v363 = vpack.c.bf16 %v362, %v362
        %v364 = vld [vmem:[%s3] sm:$0xf]
        %v365 = vld [vmem:[%s3 + $0x4] sm:$0xf]
        %v366 = vld [vmem:[%s3 + $0x8] sm:$0xf]
        %v367 = vld [vmem:[%s3 + $0xc] sm:$0xf]
        %v368 = vld [vmem:[%s4] sm:$0x1]
        %v370 = vlaneseq
        %v371 = vshrl.u32 %v370, 7
        %v372 = vsub.s32 0, %v371
        %v373 = vrot.slane %v368, %v372
        %v379 = vunpack.c.l.b16 %v364
        %v380 = vunpack.c.l.b16 %v365
        %v381 = vunpack.c.l.b16 %v366
        %v382 = vunpack.c.l.b16 %v367
        %v383 = vpack.c.b16 %v380, %v379
        %v384 = vpack.c.b16 %v382, %v381
        %387 = vmatprep.subr.bf16.mxu0 0
        %388 = vmatpush1.bf16.xpose.msra.mxu0 %v383
        %389 = vmatprep.subr.bf16.mxu0 0
        %390 = vmatpush1.bf16.xpose.msra.mxu0 %v384
        %391 = vmatprep.subr.bf16.mxu0 0
        %392 = vmatpush1.bf16.xpose.msra.mxu0 0
        %393 = vmatprep.subr.bf16.mxu0 0
        %394 = vmatpush1.bf16.xpose.msra.mxu0 0
        %395 = vmatprep.subr.bf16.mxu0 0
        %396 = vmatpush1.bf16.xpose.msra.mxu0 0
        %397 = vmatprep.subr.bf16.mxu0 0
        %398 = vmatpush1.bf16.xpose.msra.mxu0 0
        %399 = vmatprep.subr.bf16.mxu0 0
        %400 = vmatpush1.bf16.xpose.msra.mxu0 0
        %401 = vmatprep.subr.bf16.mxu0 0
        %402 = vmatpush1.bf16.xpose.msra.mxu0 0
        %403 = vmatprep.subr.bf16.mxu0 0
        %404 = vmatpush1.bf16.xpose.msra.mxu0 0
        %405 = vmatprep.subr.bf16.mxu0 0
        %406 = vmatpush1.bf16.xpose.msra.mxu0 0
        %407 = vmatprep.subr.bf16.mxu0 0
        %408 = vmatpush1.bf16.xpose.msra.mxu0 0
        %409 = vmatprep.subr.bf16.mxu0 0
        %410 = vmatpush1.bf16.xpose.msra.mxu0 0
        %411 = vmatprep.subr.bf16.mxu0 0
        %412 = vmatpush1.bf16.xpose.msra.mxu0 0
        %413 = vmatprep.subr.bf16.mxu0 0
        %414 = vmatpush1.bf16.xpose.msra.mxu0 0
        %415 = vmatprep.subr.bf16.mxu0 0
        %416 = vmatpush1.bf16.xpose.msra.mxu0 0
        %417 = vmatprep.subr.bf16.mxu0 0
        %418 = vmatpush1.bf16.xpose.msra.mxu0 0
        %419 = vmatprep.mubr.bf16.mxu0 0
        %420 = vmatmul.mubr.bf16.gmra.mrb[0].mxu0 %v363
        %v421 = vpop.f32.mrb[0].mxu0
        %v422 = vadd.f32 %v373, %v421
        %v423 = vpop.f32.mrb[0].mxu0
        %v424 = vpop.f32.mrb[0].mxu0
        %v425 = vpop.f32.mrb[0].mxu0
        %426 = vdwg.mxu0
        %427 = vst.msk [vmem:[%s215] sm:$0xff] %vm286, %v422
        %s428 = sand.u32 %s137, 1
        %s429 = scalar_lea.sflag [#allocation3], %s428
        %s430 = sand.u32 %s137, 1
        %s431 = smul.addr %s430, 8
        %s432 = scalar_lea.vmem [#allocation2], %s431
        // Predicated region
        $region41: #{tpu_custom_call.1} parent=39 // pred_check
          %p433 = pneg %p147
        $region42: #{tpu_custom_call.1} parent=39 // pred_check_branch
          %435 = sbr.rel (%p433) target = $region44
        $region43: #{tpu_custom_call.1} parent=39 // pred_region
          %s437 = ssub.s32 128, 128
          %438 = vsyncadd %s429, %s437
          %s439 = smul.addr %s19, 128
          %s440 = scalar_lea.hbm %s5, %s439
          %s442 = sshll.u32 %s432, 4
          %s443 = int_to_ptr.vmem [resolvable:$true] %s442
          %445 = dma.vmem_to_hbm [thread:$0]  %s443, 128, %s440, %s429
        $region44: #{tpu_custom_call.1} parent=39 // pred_fallthru
          _
      $region40: #{tpu_custom_call.1} parent=5 // pred_fallthru
        _
      %p446 = scmp.le.s32.totalorder 2, %s14
      // Predicated region
      $region45: #{tpu_custom_call.1} parent=5 // pred_check
        %p447 = pneg %p446
      $region46: #{tpu_custom_call.1} parent=5 // pred_check_branch
        %449 = sbr.rel (%p447) target = $region48
      $region47: #{tpu_custom_call.1} parent=5 // pred_region
        %s450 = ssub.s32 %s14, 2
        // Predicated region
        $region49: #{tpu_custom_call.1} parent=47 // pred_check
          %p451 = pneg %p153
        $region50: #{tpu_custom_call.1} parent=47 // pred_check_branch
          %453 = sbr.rel (%p451) target = $region52
        $region51: #{tpu_custom_call.1} parent=47 // pred_region
          %s454 = sand.u32 %s138, 1
          %s455 = scalar_lea.sflag [#allocation3], %s454
          %s456 = sand.u32 %s138, 1
          %s457 = smul.addr %s456, 8
          %s458 = scalar_lea.vmem [#allocation2], %s457
          %459 = dma.done %s455, 128
        $region52: #{tpu_custom_call.1} parent=47 // pred_fallthru
          _
      $region48: #{tpu_custom_call.1} parent=5 // pred_fallthru
        _
    $region6: #{tpu_custom_call.1} parent=1 // loop_footer
      %s18 = sadd.s32 1, %s14
    $region7: #{tpu_custom_call.1} parent=1 // loop_footer_branch
      %13 = sbr.rel target = $region3
    $region8: #{tpu_custom_call.1} parent=1 // loop_exit
      _
    %460 = vsyncpa [#allocation3], 1
    %s461 = scalar_lea.sflag [#allocation3], 1
    %462 = vsyncpa %s461, 1

</llo_original>
